<compile_context>
chip_gen: v7x
topology: tpu7x:2x2x1
jax: 0.10.0
libtpu: 0.0.40
codegen_flags: <defaults>
</compile_context>

<pallas_src>
import functools

import jax
import jax.numpy as jnp
from jax.experimental import pallas as pl
from jax.experimental.pallas import tpu as pltpu


def _round_up(n, m):
    return ((n + m - 1) // m) * m


def _mlp_kernel(x_ref,
                w1_ref, b1_ref,
                w2_ref, b2_ref,
                w3_ref, b3_ref,
                w4_ref, b4_ref,
                o_ref):
    x = x_ref[...]                                                    # (BM, 3)

    # Layer 1: Linear(3,128) with BN folded into (w1,b1).  K=3 is far too
    # small to be worth an MXU pass, so do it on the VPU as broadcast FMAs.
    w1 = w1_ref[...]                                                  # (3, H)
    h1 = (x[:, 0:1] * w1[0:1, :]
          + x[:, 1:2] * w1[1:2, :]
          + x[:, 2:3] * w1[2:3, :]
          + b1_ref[...])
    h1 = jnp.maximum(h1, 0.0)                                         # (BM, H)

    # Layer 2: Linear(128,128) with BN folded + ReLU (MXU).
    h2 = jnp.dot(h1, w2_ref[...], preferred_element_type=jnp.float32) + b2_ref[...]
    h2 = jnp.maximum(h2, 0.0)                                         # (BM, H)

    # Layer 3: Linear(128,64) + ReLU (MXU).
    h3 = jnp.dot(h2, w3_ref[...], preferred_element_type=jnp.float32) + b3_ref[...]
    h3 = jnp.maximum(h3, 0.0)                                         # (BM, H/2)

    # Layer 4: Linear(64,3) (MXU).
    out = jnp.dot(h3, w4_ref[...], preferred_element_type=jnp.float32) + b4_ref[...]

    # Business constraints: ReLU on columns 0 (modal) and 2 (rugi),
    # column 1 (profit) passes through unchanged.
    col = jax.lax.broadcasted_iota(jnp.int32, (1, out.shape[1]), dimension=1)
    o_ref[...] = jnp.where(col == 1, out, jnp.maximum(out, 0.0))


@functools.partial(jax.jit, static_argnames=("block_m",))
def business_constrained_mlp(x, params, block_m=1024):
    (w1, b1, s1, t1, w2, b2, s2, t2, w3, b3, w4, b4) = params

    # Fold the BatchNorm affine into the preceding Linear:
    #   (x @ w + b) * s + t  ==  x @ (w * s) + (b * s + t)
    # Exact, since ReLU immediately follows the affine.
    w1f = w1 * s1
    b1f = b1 * s1 + t1
    w2f = w2 * s2
    b2f = b2 * s2 + t2

    B, in_size = x.shape
    out_size = w4.shape[1]

    # Batch block: multiple of 8 (sublane constraint with last dim = full 3),
    # capped at block_m.  Pad B up to a block multiple, slice the result back.
    bm = min(block_m, _round_up(max(B, 1), 8))
    Bp = _round_up(B, bm)
    if Bp != B:
        x = jnp.pad(x, ((0, Bp - B), (0, 0)))

    grid = (Bp // bm,)

    def resident(arr):
        # Full-shape block, same block every grid step -> stays in VMEM.
        return pl.BlockSpec(arr.shape, lambda i: (0, 0))

    out = pl.pallas_call(
        _mlp_kernel,
        out_shape=jax.ShapeDtypeStruct((Bp, out_size), jnp.float32),
        grid=grid,
        in_specs=[
            pl.BlockSpec((bm, in_size), lambda i: (i, 0)),   # x: streamed
            resident(w1f), resident(b1f),
            resident(w2f), resident(b2f),
            resident(w3), resident(b3),
            resident(w4), resident(b4),
        ],
        out_specs=pl.BlockSpec((bm, out_size), lambda i: (i, 0)),
        compiler_params=pltpu.CompilerParams(
            dimension_semantics=("parallel",),
        ),
    )(x, w1f, b1f, w2f, b2f, w3, b3, w4, b4)

    return out[:B]


def make_params(key, input_size=3, hidden_size=128, output_size=3, eps=1e-5):
    """Deterministic synthetic parameters matching the module's shapes."""
    ks = jax.random.split(key, 8)

    def lin(kw, kb, fan_in, fan_out):
        bound = 1.0 / jnp.sqrt(fan_in)
        w = jax.random.uniform(kw, (fan_in, fan_out), jnp.float32, -bound, bound)
        b = jax.random.uniform(kb, (1, fan_out), jnp.float32, -bound, bound)
        return w, b

    w1, b1 = lin(ks[0], ks[1], input_size, hidden_size)
    w2, b2 = lin(ks[2], ks[3], hidden_size, hidden_size)
    w3, b3 = lin(ks[4], ks[5], hidden_size, hidden_size // 2)
    w4, b4 = lin(ks[6], ks[7], hidden_size // 2, output_size)

    # BatchNorm1d default init: gamma=1, beta=0, running_mean=0, running_var=1.
    gamma = jnp.ones((1, hidden_size), jnp.float32)
    beta = jnp.zeros((1, hidden_size), jnp.float32)
    r_mean = jnp.zeros((1, hidden_size), jnp.float32)
    r_var = jnp.ones((1, hidden_size), jnp.float32)

    # BN as a per-feature affine: y = x * scale + shift
    scale = gamma / jnp.sqrt(r_var + eps)
    shift = beta - r_mean * scale
    s1, t1 = scale, shift
    s2, t2 = scale, shift

    return (w1, b1, s1, t1, w2, b2, s2, t2, w3, b3, w4, b4)


def reference_forward(x, params):
    """Pure-JAX reference of the same eval-mode forward."""
    (w1, b1, s1, t1, w2, b2, s2, t2, w3, b3, w4, b4) = params
    h1 = jnp.maximum((x @ w1 + b1) * s1 + t1, 0.0)
    h2 = jnp.maximum((h1 @ w2 + b2) * s2 + t2, 0.0)
    h3 = jnp.maximum(h2 @ w3 + b3, 0.0)
    out = h3 @ w4 + b4
    modal = jnp.maximum(out[:, 0], 0.0)
    profit = out[:, 1]
    rugi = jnp.maximum(out[:, 2], 0.0)
    return jnp.stack([modal, profit, rugi], axis=1)


if __name__ == "__main__":
    key = jax.random.PRNGKey(0)
    k_x, k_p = jax.random.split(key)

    B, IN, HID, OUT = 8, 3, 128, 3
    x = jax.random.normal(k_x, (B, IN), jnp.float32)
    params = make_params(k_p, IN, HID, OUT)

    y = jax.block_until_ready(business_constrained_mlp(x, params))
    y_ref = reference_forward(x, params)
    assert y.shape == (B, OUT)
    assert jnp.allclose(y, y_ref, atol=1e-5, rtol=1e-5)

    # Exercise the multi-block grid + padded last block path.
    x2 = jax.random.normal(jax.random.PRNGKey(1), (37, IN), jnp.float32)
    y2 = jax.block_until_ready(business_constrained_mlp(x2, params, block_m=16))
    y2_ref = reference_forward(x2, params)
    assert y2.shape == (37, OUT)
    assert jnp.allclose(y2, y2_ref, atol=1e-5, rtol=1e-5)

    print("KERNEL_OK")
</pallas_src>

<mosaic_0001>
module attributes {stable_mosaic.version = 11 : i64} {
  func.func @_mlp_kernel(%arg0: i32, %arg1: memref<8x3xf32, #tpu.memory_space<vmem>>, %arg2: memref<3x128xf32, #tpu.memory_space<vmem>>, %arg3: memref<1x128xf32, #tpu.memory_space<vmem>>, %arg4: memref<128x128xf32, #tpu.memory_space<vmem>>, %arg5: memref<1x128xf32, #tpu.memory_space<vmem>>, %arg6: memref<128x64xf32, #tpu.memory_space<vmem>>, %arg7: memref<1x64xf32, #tpu.memory_space<vmem>>, %arg8: memref<64x3xf32, #tpu.memory_space<vmem>>, %arg9: memref<1x3xf32, #tpu.memory_space<vmem>>, %arg10: memref<8x3xf32, #tpu.memory_space<vmem>>) attributes {dimension_semantics = [#tpu.dimension_semantics<parallel>], iteration_bounds = array<i64: 1>, scalar_prefetch = 0 : i64, scratch_operands = 0 : i64, tpu.core_type = #tpu.core_type<tc>, window_params = [{transform_indices = @transform_0, window_bounds = array<i64: 8, 3>}, {pipeline_mode = #tpu.pipeline_mode<synchronous>, transform_indices = @transform_1, window_bounds = array<i64: 3, 128>}, {pipeline_mode = #tpu.pipeline_mode<synchronous>, transform_indices = @transform_2, window_bounds = array<i64: 1, 128>}, {pipeline_mode = #tpu.pipeline_mode<synchronous>, transform_indices = @transform_3, window_bounds = array<i64: 128, 128>}, {pipeline_mode = #tpu.pipeline_mode<synchronous>, transform_indices = @transform_4, window_bounds = array<i64: 1, 128>}, {pipeline_mode = #tpu.pipeline_mode<synchronous>, transform_indices = @transform_5, window_bounds = array<i64: 128, 64>}, {pipeline_mode = #tpu.pipeline_mode<synchronous>, transform_indices = @transform_6, window_bounds = array<i64: 1, 64>}, {pipeline_mode = #tpu.pipeline_mode<synchronous>, transform_indices = @transform_7, window_bounds = array<i64: 64, 3>}, {pipeline_mode = #tpu.pipeline_mode<synchronous>, transform_indices = @transform_8, window_bounds = array<i64: 1, 3>}, {transform_indices = @transform_9, window_bounds = array<i64: 8, 3>}]} {
    %c0 = arith.constant 0 : index
    %c0_0 = arith.constant 0 : index
    %0 = vector.load %arg1[%c0, %c0_0] : memref<8x3xf32, #tpu.memory_space<vmem>>, vector<8x3xf32>
    %c0_1 = arith.constant 0 : index
    %c0_2 = arith.constant 0 : index
    %1 = vector.load %arg2[%c0_1, %c0_2] : memref<3x128xf32, #tpu.memory_space<vmem>>, vector<3x128xf32>
    %2 = vector.extract_strided_slice %0 {offsets = [0, 0], sizes = [8, 1], strides = [1, 1]} : vector<8x3xf32> to vector<8x1xf32>
    %3 = vector.extract_strided_slice %1 {offsets = [0, 0], sizes = [1, 128], strides = [1, 1]} : vector<3x128xf32> to vector<1x128xf32>
    %4 = vector.broadcast %2 : vector<8x1xf32> to vector<8x128xf32>
    %5 = vector.broadcast %3 : vector<1x128xf32> to vector<8x128xf32>
    %6 = arith.mulf %4, %5 : vector<8x128xf32>
    %7 = vector.extract_strided_slice %0 {offsets = [0, 1], sizes = [8, 1], strides = [1, 1]} : vector<8x3xf32> to vector<8x1xf32>
    %8 = vector.extract_strided_slice %1 {offsets = [1, 0], sizes = [1, 128], strides = [1, 1]} : vector<3x128xf32> to vector<1x128xf32>
    %9 = vector.broadcast %7 : vector<8x1xf32> to vector<8x128xf32>
    %10 = vector.broadcast %8 : vector<1x128xf32> to vector<8x128xf32>
    %11 = arith.mulf %9, %10 : vector<8x128xf32>
    %12 = arith.addf %6, %11 : vector<8x128xf32>
    %13 = vector.extract_strided_slice %0 {offsets = [0, 2], sizes = [8, 1], strides = [1, 1]} : vector<8x3xf32> to vector<8x1xf32>
    %14 = vector.extract_strided_slice %1 {offsets = [2, 0], sizes = [1, 128], strides = [1, 1]} : vector<3x128xf32> to vector<1x128xf32>
    %15 = vector.broadcast %13 : vector<8x1xf32> to vector<8x128xf32>
    %16 = vector.broadcast %14 : vector<1x128xf32> to vector<8x128xf32>
    %17 = arith.mulf %15, %16 : vector<8x128xf32>
    %18 = arith.addf %12, %17 : vector<8x128xf32>
    %c0_3 = arith.constant 0 : index
    %c0_4 = arith.constant 0 : index
    %19 = vector.load %arg3[%c0_3, %c0_4] : memref<1x128xf32, #tpu.memory_space<vmem>>, vector<1x128xf32>
    %20 = vector.broadcast %19 : vector<1x128xf32> to vector<8x128xf32>
    %21 = arith.addf %18, %20 : vector<8x128xf32>
    %cst = arith.constant 0.000000e+00 : f32
    %22 = vector.broadcast %cst : f32 to vector<8x128xf32>
    %23 = arith.maximumf %21, %22 : vector<8x128xf32>
    %c0_5 = arith.constant 0 : index
    %c0_6 = arith.constant 0 : index
    %24 = vector.load %arg4[%c0_5, %c0_6] : memref<128x128xf32, #tpu.memory_space<vmem>>, vector<128x128xf32>
    %cst_7 = arith.constant dense<0.000000e+00> : vector<8x128xf32>
    %25 = tpu.matmul %23, %24, %cst_7 {dimension_numbers = #tpu.dot_dimension_numbers<[1], [0], [0], [1], [0, 0, 1, 1], [], []>} : vector<8x128xf32>, vector<128x128xf32>, vector<8x128xf32> -> vector<8x128xf32>
    %c0_8 = arith.constant 0 : index
    %c0_9 = arith.constant 0 : index
    %26 = vector.load %arg5[%c0_8, %c0_9] : memref<1x128xf32, #tpu.memory_space<vmem>>, vector<1x128xf32>
    %27 = vector.broadcast %26 : vector<1x128xf32> to vector<8x128xf32>
    %28 = arith.addf %25, %27 : vector<8x128xf32>
    %cst_10 = arith.constant 0.000000e+00 : f32
    %29 = vector.broadcast %cst_10 : f32 to vector<8x128xf32>
    %30 = arith.maximumf %28, %29 : vector<8x128xf32>
    %c0_11 = arith.constant 0 : index
    %c0_12 = arith.constant 0 : index
    %31 = vector.load %arg6[%c0_11, %c0_12] : memref<128x64xf32, #tpu.memory_space<vmem>>, vector<128x64xf32>
    %cst_13 = arith.constant dense<0.000000e+00> : vector<8x64xf32>
    %32 = tpu.matmul %30, %31, %cst_13 {dimension_numbers = #tpu.dot_dimension_numbers<[1], [0], [0], [1], [0, 0, 1, 1], [], []>} : vector<8x128xf32>, vector<128x64xf32>, vector<8x64xf32> -> vector<8x64xf32>
    %c0_14 = arith.constant 0 : index
    %c0_15 = arith.constant 0 : index
    %33 = vector.load %arg7[%c0_14, %c0_15] : memref<1x64xf32, #tpu.memory_space<vmem>>, vector<1x64xf32>
    %34 = vector.broadcast %33 : vector<1x64xf32> to vector<8x64xf32>
    %35 = arith.addf %32, %34 : vector<8x64xf32>
    %cst_16 = arith.constant 0.000000e+00 : f32
    %36 = vector.broadcast %cst_16 : f32 to vector<8x64xf32>
    %37 = arith.maximumf %35, %36 : vector<8x64xf32>
    %c0_17 = arith.constant 0 : index
    %c0_18 = arith.constant 0 : index
    %38 = vector.load %arg8[%c0_17, %c0_18] : memref<64x3xf32, #tpu.memory_space<vmem>>, vector<64x3xf32>
    %cst_19 = arith.constant dense<0.000000e+00> : vector<8x3xf32>
    %39 = tpu.matmul %37, %38, %cst_19 {dimension_numbers = #tpu.dot_dimension_numbers<[1], [0], [0], [1], [0, 0, 1, 1], [], []>} : vector<8x64xf32>, vector<64x3xf32>, vector<8x3xf32> -> vector<8x3xf32>
    %c0_20 = arith.constant 0 : index
    %c0_21 = arith.constant 0 : index
    %40 = vector.load %arg9[%c0_20, %c0_21] : memref<1x3xf32, #tpu.memory_space<vmem>>, vector<1x3xf32>
    %41 = vector.broadcast %40 : vector<1x3xf32> to vector<8x3xf32>
    %42 = arith.addf %39, %41 : vector<8x3xf32>
    %43 = tpu.iota {dimensions = array<i32: 1>} : vector<1x3xi32>
    %c1_i32 = arith.constant 1 : i32
    %44 = vector.broadcast %c1_i32 : i32 to vector<1x3xi32>
    %45 = arith.cmpi eq, %43, %44 : vector<1x3xi32>
    %cst_22 = arith.constant 0.000000e+00 : f32
    %46 = vector.broadcast %cst_22 : f32 to vector<8x3xf32>
    %47 = arith.maximumf %42, %46 : vector<8x3xf32>
    %48 = vector.shape_cast %45 : vector<1x3xi1> to vector<1x3xi1>
    %49 = vector.broadcast %48 : vector<1x3xi1> to vector<8x3xi1>
    %50 = arith.select %49, %42, %47 : vector<8x3xi1>, vector<8x3xf32>
    %c0_23 = arith.constant 0 : index
    %c0_24 = arith.constant 0 : index
    %51 = vector.load %arg10[%c0_23, %c0_24] : memref<8x3xf32, #tpu.memory_space<vmem>>, vector<8x3xf32>
    tpu.vector_store %arg10[%c0_23, %c0_24], %50 {strides = array<i32>} : memref<8x3xf32, #tpu.memory_space<vmem>>, vector<8x3xf32>,
    return
  }
  func.func @transform_0(%arg0: i32) -> (i32, i32) {
    %c0_i32 = arith.constant 0 : i32
    %c0_i32_0 = arith.constant 0 : i32
    return %arg0, %c0_i32 : i32, i32
  }
  func.func @transform_1(%arg0: i32) -> (i32, i32) {
    %c0_i32 = arith.constant 0 : i32
    %c0_i32_0 = arith.constant 0 : i32
    %c0_i32_1 = arith.constant 0 : i32
    return %c0_i32, %c0_i32_0 : i32, i32
  }
  func.func @transform_2(%arg0: i32) -> (i32, i32) {
    %c0_i32 = arith.constant 0 : i32
    %c0_i32_0 = arith.constant 0 : i32
    %c0_i32_1 = arith.constant 0 : i32
    return %c0_i32, %c0_i32_0 : i32, i32
  }
  func.func @transform_3(%arg0: i32) -> (i32, i32) {
    %c0_i32 = arith.constant 0 : i32
    %c0_i32_0 = arith.constant 0 : i32
    %c0_i32_1 = arith.constant 0 : i32
    return %c0_i32, %c0_i32_0 : i32, i32
  }
  func.func @transform_4(%arg0: i32) -> (i32, i32) {
    %c0_i32 = arith.constant 0 : i32
    %c0_i32_0 = arith.constant 0 : i32
    %c0_i32_1 = arith.constant 0 : i32
    return %c0_i32, %c0_i32_0 : i32, i32
  }
  func.func @transform_5(%arg0: i32) -> (i32, i32) {
    %c0_i32 = arith.constant 0 : i32
    %c0_i32_0 = arith.constant 0 : i32
    %c0_i32_1 = arith.constant 0 : i32
    return %c0_i32, %c0_i32_0 : i32, i32
  }
  func.func @transform_6(%arg0: i32) -> (i32, i32) {
    %c0_i32 = arith.constant 0 : i32
    %c0_i32_0 = arith.constant 0 : i32
    %c0_i32_1 = arith.constant 0 : i32
    return %c0_i32, %c0_i32_0 : i32, i32
  }
  func.func @transform_7(%arg0: i32) -> (i32, i32) {
    %c0_i32 = arith.constant 0 : i32
    %c0_i32_0 = arith.constant 0 : i32
    %c0_i32_1 = arith.constant 0 : i32
    return %c0_i32, %c0_i32_0 : i32, i32
  }
  func.func @transform_8(%arg0: i32) -> (i32, i32) {
    %c0_i32 = arith.constant 0 : i32
    %c0_i32_0 = arith.constant 0 : i32
    %c0_i32_1 = arith.constant 0 : i32
    return %c0_i32, %c0_i32_0 : i32, i32
  }
  func.func @transform_9(%arg0: i32) -> (i32, i32) {
    %c0_i32 = arith.constant 0 : i32
    %c0_i32_0 = arith.constant 0 : i32
    return %arg0, %c0_i32 : i32, i32
  }
}

</mosaic_0001>

<llo_original>
// kernel: business_constrained_mlp.1
$region0: #{business_constrained_mlp.1}
  #allocation0 [shape = 'u32[]', space=smem, size = 0x4, offset = 0x4, fixed_abs, tag = 'smem constant byte address 0x4 - core index']
  #allocation1 [shape = 'u32[144,128]{1,0:T(1,128)}', space=vmem, size = 0x12000, scoped, tag = 'internal scratch']
  %s0 = inlined_call_operand.vmem [shape: f32[8,3], index: 0, kind: input, shape index: {}]
  %s1 = inlined_call_operand.vmem [shape: f32[3,128], index: 1, kind: input, shape index: {}]
  %s2 = inlined_call_operand.vmem [shape: f32[1,128], index: 2, kind: input, shape index: {}]
  %s3 = inlined_call_operand.vmem [shape: f32[128,128], index: 3, kind: input, shape index: {}]
  %s4 = inlined_call_operand.vmem [shape: f32[1,128], index: 4, kind: input, shape index: {}]
  %s5 = inlined_call_operand.vmem [shape: f32[128,64], index: 5, kind: input, shape index: {}]
  %s6 = inlined_call_operand.vmem [shape: f32[1,64], index: 6, kind: input, shape index: {}]
  %s7 = inlined_call_operand.vmem [shape: f32[64,3], index: 7, kind: input, shape index: {}]
  %s8 = inlined_call_operand.vmem [shape: f32[1,3], index: 8, kind: input, shape index: {}]
  %s9 = inlined_call_operand.vmem [shape: f32[8,3], index: 9, kind: output, shape index: {}]
  %s10 = sld [smem:[#allocation0]]
  $region46: #{business_constrained_mlp.1} parent=0
    _
  %s12 = ssub.s32 1, %s10
  %s13 = scalar_select 0, %s12, %s10
  // Predicated region
  $region2: #{business_constrained_mlp.1} parent=0 // pred_check
    _
  $region3: #{business_constrained_mlp.1} parent=0 // pred_check_branch
    %15 = sbr.rel (0) target = $region5
  $region4: #{business_constrained_mlp.1} parent=0 // pred_region
    _
  $region5: #{business_constrained_mlp.1} parent=0 // pred_fallthru
    _
  // Predicated region
  $region6: #{business_constrained_mlp.1} parent=0 // pred_check
    _
  $region7: #{business_constrained_mlp.1} parent=0 // pred_check_branch
    %17 = sbr.rel (0) target = $region9
  $region8: #{business_constrained_mlp.1} parent=0 // pred_region
    _
  $region9: #{business_constrained_mlp.1} parent=0 // pred_fallthru
    _
  // Predicated region
  $region10: #{business_constrained_mlp.1} parent=0 // pred_check
    _
  $region11: #{business_constrained_mlp.1} parent=0 // pred_check_branch
    %19 = sbr.rel (0) target = $region13
  $region12: #{business_constrained_mlp.1} parent=0 // pred_region
    _
  $region13: #{business_constrained_mlp.1} parent=0 // pred_fallthru
    _
  // Predicated region
  $region14: #{business_constrained_mlp.1} parent=0 // pred_check
    _
  $region15: #{business_constrained_mlp.1} parent=0 // pred_check_branch
    %21 = sbr.rel (0) target = $region17
  $region16: #{business_constrained_mlp.1} parent=0 // pred_region
    _
  $region17: #{business_constrained_mlp.1} parent=0 // pred_fallthru
    _
  // Predicated region
  $region18: #{business_constrained_mlp.1} parent=0 // pred_check
    _
  $region19: #{business_constrained_mlp.1} parent=0 // pred_check_branch
    %23 = sbr.rel (0) target = $region21
  $region20: #{business_constrained_mlp.1} parent=0 // pred_region
    _
  $region21: #{business_constrained_mlp.1} parent=0 // pred_fallthru
    _
  // Predicated region
  $region22: #{business_constrained_mlp.1} parent=0 // pred_check
    _
  $region23: #{business_constrained_mlp.1} parent=0 // pred_check_branch
    %25 = sbr.rel (0) target = $region25
  $region24: #{business_constrained_mlp.1} parent=0 // pred_region
    _
  $region25: #{business_constrained_mlp.1} parent=0 // pred_fallthru
    _
  // Predicated region
  $region26: #{business_constrained_mlp.1} parent=0 // pred_check
    _
  $region27: #{business_constrained_mlp.1} parent=0 // pred_check_branch
    %27 = sbr.rel (0) target = $region29
  $region28: #{business_constrained_mlp.1} parent=0 // pred_region
    _
  $region29: #{business_constrained_mlp.1} parent=0 // pred_fallthru
    _
  // Predicated region
  $region30: #{business_constrained_mlp.1} parent=0 // pred_check
    _
  $region31: #{business_constrained_mlp.1} parent=0 // pred_check_branch
    %29 = sbr.rel (0) target = $region33
  $region32: #{business_constrained_mlp.1} parent=0 // pred_region
    _
  $region33: #{business_constrained_mlp.1} parent=0 // pred_fallthru
    _
  // Predicated region
  $region34: #{business_constrained_mlp.1} parent=0 // pred_check
    _
  $region35: #{business_constrained_mlp.1} parent=0 // pred_check_branch
    %31 = sbr.rel (0) target = $region37
  $region36: #{business_constrained_mlp.1} parent=0 // pred_region
    _
  $region37: #{business_constrained_mlp.1} parent=0 // pred_fallthru
    _
  %v32 = vld [vmem:[%s0] sm:$0xff]
  %v33 = vld [vmem:[%s1] sm:$0x7]
  %35 = vset.pattern.permute.xlu0 0
  %36 = vperm.xlu0 %35, %v32
  %v37 = vpop.permute.xlu0 %36
  %v39 = vlaneseq
  %v40 = vshrl.u32 %v39, 7
  %v41 = vsub.s32 0, %v40
  %v42 = vrot.slane %v33, %v41
  %v43 = vmul.f32 %v37, %v42
  %44 = vset.pattern.permute.xlu0 1
  %45 = vperm.xlu0 %44, %v32
  %v46 = vpop.permute.xlu0 %45
  %v48 = vlaneseq
  %v49 = vshrl.u32 %v48, 7
  %v50 = vsub.s32 1, %v49
  %v51 = vrot.slane %v33, %v50
  %v52 = vmul.f32 %v46, %v51
  %v53 = vadd.f32 %v43, %v52
  %54 = vset.pattern.permute.xlu0 2
  %55 = vperm.xlu0 %54, %v32
  %v56 = vpop.permute.xlu0 %55
  %v58 = vlaneseq
  %v59 = vshrl.u32 %v58, 7
  %v60 = vsub.s32 2, %v59
  %v61 = vrot.slane %v33, %v60
  %v62 = vmul.f32 %v56, %v61
  %v63 = vadd.f32 %v53, %v62
  %v64 = vld [vmem:[%s2] sm:$0x1]
  %v66 = vlaneseq
  %v67 = vshrl.u32 %v66, 7
  %v68 = vsub.s32 0, %v67
  %v69 = vrot.slane %v64, %v68
  %v71 = vadd.f32 %v63, %v69
  %v72 = vmax.f32 %v71, 0.0
  %v73 = vld [vmem:[%s3] sm:$0xff]
  %v74 = vld [vmem:[%s3 + $0x8] sm:$0xff]
  %v75 = vld [vmem:[%s3 + $0x10] sm:$0xff]
  %v76 = vld [vmem:[%s3 + $0x18] sm:$0xff]
  %v77 = vld [vmem:[%s3 + $0x20] sm:$0xff]
  %v78 = vld [vmem:[%s3 + $0x28] sm:$0xff]
  %v79 = vld [vmem:[%s3 + $0x30] sm:$0xff]
  %v80 = vld [vmem:[%s3 + $0x38] sm:$0xff]
  %v81 = vld [vmem:[%s3 + $0x40] sm:$0xff]
  %v82 = vld [vmem:[%s3 + $0x48] sm:$0xff]
  %v83 = vld [vmem:[%s3 + $0x50] sm:$0xff]
  %v84 = vld [vmem:[%s3 + $0x58] sm:$0xff]
  %v85 = vld [vmem:[%s3 + $0x60] sm:$0xff]
  %v86 = vld [vmem:[%s3 + $0x68] sm:$0xff]
  %v87 = vld [vmem:[%s3 + $0x70] sm:$0xff]
  %v88 = vld [vmem:[%s3 + $0x78] sm:$0xff]
  %v89 = vld [vmem:[%s4] sm:$0x1]
  %v91 = vlaneseq
  %v92 = vshrl.u32 %v91, 7
  %v93 = vsub.s32 0, %v92
  %v94 = vrot.slane %v89, %v93
  %96 = vmatprep.subr.mxu0 0.0
  %97 = vmatpush1.msra.mxu0 %v73
  %98 = vmatprep.subr.mxu0 0.0
  %99 = vmatpush1.msra.mxu0 %v74
  %100 = vmatprep.subr.mxu0 0.0
  %101 = vmatpush1.msra.mxu0 %v75
  %102 = vmatprep.subr.mxu0 0.0
  %103 = vmatpush1.msra.mxu0 %v76
  %104 = vmatprep.subr.mxu0 0.0
  %105 = vmatpush1.msra.mxu0 %v77
  %106 = vmatprep.subr.mxu0 0.0
  %107 = vmatpush1.msra.mxu0 %v78
  %108 = vmatprep.subr.mxu0 0.0
  %109 = vmatpush1.msra.mxu0 %v79
  %110 = vmatprep.subr.mxu0 0.0
  %111 = vmatpush1.msra.mxu0 %v80
  %112 = vmatprep.subr.mxu0 0.0
  %113 = vmatpush1.msra.mxu0 %v81
  %114 = vmatprep.subr.mxu0 0.0
  %115 = vmatpush1.msra.mxu0 %v82
  %116 = vmatprep.subr.mxu0 0.0
  %117 = vmatpush1.msra.mxu0 %v83
  %118 = vmatprep.subr.mxu0 0.0
  %119 = vmatpush1.msra.mxu0 %v84
  %120 = vmatprep.subr.mxu0 0.0
  %121 = vmatpush1.msra.mxu0 %v85
  %122 = vmatprep.subr.mxu0 0.0
  %123 = vmatpush1.msra.mxu0 %v86
  %124 = vmatprep.subr.mxu0 0.0
  %125 = vmatpush1.msra.mxu0 %v87
  %126 = vmatprep.subr.mxu0 0.0
  %127 = vmatpush1.msra.mxu0 %v88
  %128 = vmatprep.subr.mxu0 0.0
  %129 = vmatpush1.msra.mxu0 0.0
  %130 = vmatprep.subr.mxu0 0.0
  %131 = vmatpush1.msra.mxu0 0.0
  %132 = vmatprep.subr.mxu0 0.0
  %133 = vmatpush1.msra.mxu0 0.0
  %134 = vmatprep.subr.mxu0 0.0
  %135 = vmatpush1.msra.mxu0 0.0
  %136 = vmatprep.subr.mxu0 0.0
  %137 = vmatpush1.msra.mxu0 0.0
  %138 = vmatprep.subr.mxu0 0.0
  %139 = vmatpush1.msra.mxu0 0.0
  %140 = vmatprep.subr.mxu0 0.0
  %141 = vmatpush1.msra.mxu0 0.0
  %142 = vmatprep.subr.mxu0 0.0
  %143 = vmatpush1.msra.mxu0 0.0
  %144 = vmatprep.subr.mxu0 0.0
  %145 = vmatpush1.msra.mxu0 0.0
  %146 = vmatprep.subr.mxu0 0.0
  %147 = vmatpush1.msra.mxu0 0.0
  %148 = vmatprep.subr.mxu0 0.0
  %149 = vmatpush1.msra.mxu0 0.0
  %150 = vmatprep.subr.mxu0 0.0
  %151 = vmatpush1.msra.mxu0 0.0
  %152 = vmatprep.subr.mxu0 0.0
  %153 = vmatpush1.msra.mxu0 0.0
  %154 = vmatprep.subr.mxu0 0.0
  %155 = vmatpush1.msra.mxu0 0.0
  %156 = vmatprep.subr.mxu0 0.0
  %157 = vmatpush1.msra.mxu0 0.0
  %158 = vmatprep.subr.mxu0 0.0
  %159 = vmatpush1.msra.mxu0 0.0
  %160 = vmatprep.mubr.f32.mxu0 0.0
  %161 = vmatmul.mubr.f32.gmra.mrb[0].mxu0 %v72
  %v162 = vpop.f32.mrb[0].mxu0
  %v163 = vadd.f32 %v94, %v162
  %v164 = vpop.f32.mrb[0].mxu0
  %165 = vdwg.mxu0
  %v166 = vmax.f32 %v163, 0.0
  %v167 = vld [vmem:[%s5] sm:$0xff]
  %v168 = vld [vmem:[%s5 + $0x8] sm:$0xff]
  %v169 = vld [vmem:[%s5 + $0x10] sm:$0xff]
  %v170 = vld [vmem:[%s5 + $0x18] sm:$0xff]
  %v171 = vld [vmem:[%s5 + $0x20] sm:$0xff]
  %v172 = vld [vmem:[%s5 + $0x28] sm:$0xff]
  %v173 = vld [vmem:[%s5 + $0x30] sm:$0xff]
  %v174 = vld [vmem:[%s5 + $0x38] sm:$0xff]
  %v175 = vld [vmem:[%s5 + $0x40] sm:$0xff]
  %v176 = vld [vmem:[%s5 + $0x48] sm:$0xff]
  %v177 = vld [vmem:[%s5 + $0x50] sm:$0xff]
  %v178 = vld [vmem:[%s5 + $0x58] sm:$0xff]
  %v179 = vld [vmem:[%s5 + $0x60] sm:$0xff]
  %v180 = vld [vmem:[%s5 + $0x68] sm:$0xff]
  %v181 = vld [vmem:[%s5 + $0x70] sm:$0xff]
  %v182 = vld [vmem:[%s5 + $0x78] sm:$0xff]
  %v183 = vld [vmem:[%s6] sm:$0x1]
  %v185 = vlaneseq
  %v186 = vshrl.u32 %v185, 7
  %v187 = vsub.s32 0, %v186
  %v188 = vrot.slane %v183, %v187
  %190 = vmatprep.subr.mxu0 0.0
  %191 = vmatpush1.msra.mxu0 %v167
  %192 = vmatprep.subr.mxu0 0.0
  %193 = vmatpush1.msra.mxu0 %v168
  %194 = vmatprep.subr.mxu0 0.0
  %195 = vmatpush1.msra.mxu0 %v169
  %196 = vmatprep.subr.mxu0 0.0
  %197 = vmatpush1.msra.mxu0 %v170
  %198 = vmatprep.subr.mxu0 0.0
  %199 = vmatpush1.msra.mxu0 %v171
  %200 = vmatprep.subr.mxu0 0.0
  %201 = vmatpush1.msra.mxu0 %v172
  %202 = vmatprep.subr.mxu0 0.0
  %203 = vmatpush1.msra.mxu0 %v173
  %204 = vmatprep.subr.mxu0 0.0
  %205 = vmatpush1.msra.mxu0 %v174
  %206 = vmatprep.subr.mxu0 0.0
  %207 = vmatpush1.msra.mxu0 %v175
  %208 = vmatprep.subr.mxu0 0.0
  %209 = vmatpush1.msra.mxu0 %v176
  %210 = vmatprep.subr.mxu0 0.0
  %211 = vmatpush1.msra.mxu0 %v177
  %212 = vmatprep.subr.mxu0 0.0
  %213 = vmatpush1.msra.mxu0 %v178
  %214 = vmatprep.subr.mxu0 0.0
  %215 = vmatpush1.msra.mxu0 %v179
  %216 = vmatprep.subr.mxu0 0.0
  %217 = vmatpush1.msra.mxu0 %v180
  %218 = vmatprep.subr.mxu0 0.0
  %219 = vmatpush1.msra.mxu0 %v181
  %220 = vmatprep.subr.mxu0 0.0
  %221 = vmatpush1.msra.mxu0 %v182
  %222 = vmatprep.subr.mxu0 0.0
  %223 = vmatpush1.msra.mxu0 0.0
  %224 = vmatprep.subr.mxu0 0.0
  %225 = vmatpush1.msra.mxu0 0.0
  %226 = vmatprep.subr.mxu0 0.0
  %227 = vmatpush1.msra.mxu0 0.0
  %228 = vmatprep.subr.mxu0 0.0
  %229 = vmatpush1.msra.mxu0 0.0
  %230 = vmatprep.subr.mxu0 0.0
  %231 = vmatpush1.msra.mxu0 0.0
  %232 = vmatprep.subr.mxu0 0.0
  %233 = vmatpush1.msra.mxu0 0.0
  %234 = vmatprep.subr.mxu0 0.0
  %235 = vmatpush1.msra.mxu0 0.0
  %236 = vmatprep.subr.mxu0 0.0
  %237 = vmatpush1.msra.mxu0 0.0
  %238 = vmatprep.subr.mxu0 0.0
  %239 = vmatpush1.msra.mxu0 0.0
  %240 = vmatprep.subr.mxu0 0.0
  %241 = vmatpush1.msra.mxu0 0.0
  %242 = vmatprep.subr.mxu0 0.0
  %243 = vmatpush1.msra.mxu0 0.0
  %244 = vmatprep.subr.mxu0 0.0
  %245 = vmatpush1.msra.mxu0 0.0
  %246 = vmatprep.subr.mxu0 0.0
  %247 = vmatpush1.msra.mxu0 0.0
  %248 = vmatprep.subr.mxu0 0.0
  %249 = vmatpush1.msra.mxu0 0.0
  %250 = vmatprep.subr.mxu0 0.0
  %251 = vmatpush1.msra.mxu0 0.0
  %252 = vmatprep.subr.mxu0 0.0
  %253 = vmatpush1.msra.mxu0 0.0
  %254 = vmatprep.mubr.f32.mxu0 0.0
  %255 = vmatmul.mubr.f32.gmra.mrb[0].mxu0 %v166
  %v256 = vpop.f32.mrb[0].mxu0
  %v257 = vadd.f32 %v188, %v256
  %v258 = vpop.f32.mrb[0].mxu0
  %259 = vdwg.mxu0
  %v260 = vmax.f32 %v257, 0.0
  %v261 = vld [vmem:[%s7] sm:$0xff]
  %v262 = vld [vmem:[%s7 + $0x8] sm:$0xff]
  %v263 = vld [vmem:[%s7 + $0x10] sm:$0xff]
  %v264 = vld [vmem:[%s7 + $0x18] sm:$0xff]
  %v265 = vld [vmem:[%s7 + $0x20] sm:$0xff]
  %v266 = vld [vmem:[%s7 + $0x28] sm:$0xff]
  %v267 = vld [vmem:[%s7 + $0x30] sm:$0xff]
  %v268 = vld [vmem:[%s7 + $0x38] sm:$0xff]
  %v269 = vld [vmem:[%s8] sm:$0x1]
  %v271 = vlaneseq
  %v272 = vshrl.u32 %v271, 7
  %v273 = vsub.s32 0, %v272
  %v274 = vrot.slane %v269, %v273
  %vm276 = vcmask 523264
  %v278 = vsel %vm276, %v260, 0
  %280 = vmatprep.subr.mxu0 0.0
  %281 = vmatpush1.msra.mxu0 %v261
  %282 = vmatprep.subr.mxu0 0.0
  %283 = vmatpush1.msra.mxu0 %v262
  %284 = vmatprep.subr.mxu0 0.0
  %285 = vmatpush1.msra.mxu0 %v263
  %286 = vmatprep.subr.mxu0 0.0
  %287 = vmatpush1.msra.mxu0 %v264
  %288 = vmatprep.subr.mxu0 0.0
  %289 = vmatpush1.msra.mxu0 %v265
  %290 = vmatprep.subr.mxu0 0.0
  %291 = vmatpush1.msra.mxu0 %v266
  %292 = vmatprep.subr.mxu0 0.0
  %293 = vmatpush1.msra.mxu0 %v267
  %294 = vmatprep.subr.mxu0 0.0
  %295 = vmatpush1.msra.mxu0 %v268
  %296 = vmatprep.subr.mxu0 0.0
  %297 = vmatpush1.msra.mxu0 0.0
  %298 = vmatprep.subr.mxu0 0.0
  %299 = vmatpush1.msra.mxu0 0.0
  %300 = vmatprep.subr.mxu0 0.0
  %301 = vmatpush1.msra.mxu0 0.0
  %302 = vmatprep.subr.mxu0 0.0
  %303 = vmatpush1.msra.mxu0 0.0
  %304 = vmatprep.subr.mxu0 0.0
  %305 = vmatpush1.msra.mxu0 0.0
  %306 = vmatprep.subr.mxu0 0.0
  %307 = vmatpush1.msra.mxu0 0.0
  %308 = vmatprep.subr.mxu0 0.0
  %309 = vmatpush1.msra.mxu0 0.0
  %310 = vmatprep.subr.mxu0 0.0
  %311 = vmatpush1.msra.mxu0 0.0
  %312 = vmatprep.subr.mxu0 0.0
  %313 = vmatpush1.msra.mxu0 0.0
  %314 = vmatprep.subr.mxu0 0.0
  %315 = vmatpush1.msra.mxu0 0.0
  %316 = vmatprep.subr.mxu0 0.0
  %317 = vmatpush1.msra.mxu0 0.0
  %318 = vmatprep.subr.mxu0 0.0
  %319 = vmatpush1.msra.mxu0 0.0
  %320 = vmatprep.subr.mxu0 0.0
  %321 = vmatpush1.msra.mxu0 0.0
  %322 = vmatprep.subr.mxu0 0.0
  %323 = vmatpush1.msra.mxu0 0.0
  %324 = vmatprep.subr.mxu0 0.0
  %325 = vmatpush1.msra.mxu0 0.0
  %326 = vmatprep.subr.mxu0 0.0
  %327 = vmatpush1.msra.mxu0 0.0
  %328 = vmatprep.subr.mxu0 0.0
  %329 = vmatpush1.msra.mxu0 0.0
  %330 = vmatprep.subr.mxu0 0.0
  %331 = vmatpush1.msra.mxu0 0.0
  %332 = vmatprep.subr.mxu0 0.0
  %333 = vmatpush1.msra.mxu0 0.0
  %334 = vmatprep.subr.mxu0 0.0
  %335 = vmatpush1.msra.mxu0 0.0
  %336 = vmatprep.subr.mxu0 0.0
  %337 = vmatpush1.msra.mxu0 0.0
  %338 = vmatprep.subr.mxu0 0.0
  %339 = vmatpush1.msra.mxu0 0.0
  %340 = vmatprep.subr.mxu0 0.0
  %341 = vmatpush1.msra.mxu0 0.0
  %342 = vmatprep.subr.mxu0 0.0
  %343 = vmatpush1.msra.mxu0 0.0
  %344 = vmatprep.mubr.f32.mxu0 0.0
  %345 = vmatmul.mubr.f32.gmra.mrb[0].mxu0 %v278
  %v346 = vpop.f32.mrb[0].mxu0
  %v347 = vadd.f32 %v274, %v346
  %v348 = vpop.f32.mrb[0].mxu0
  %349 = vdwg.mxu0
  %v350 = vlaneseq
  %v351 = vand.u32 %v350, 127
  %vm352 = vcmp.eq.s32.totalorder %v351, 1
  %v353 = vmax.f32 %v347, 0.0
  %v354 = vsel %vm352, 1, 0
  %vm355 = vcmp.eq.s32.totalorder %v354, 1
  %v356 = vsel %vm355, %v347, %v353
  %vm357 = vcmask 23552
  %358 = vst.msk [vmem:[%s9] sm:$0xff] %vm357, %v356
  // Predicated region
  $region38: #{business_constrained_mlp.1} parent=0 // pred_check
    _
  $region39: #{business_constrained_mlp.1} parent=0 // pred_check_branch
    %360 = sbr.rel (0) target = $region41
  $region40: #{business_constrained_mlp.1} parent=0 // pred_region
    _
  $region41: #{business_constrained_mlp.1} parent=0 // pred_fallthru
    _
  // Predicated region
  $region42: #{business_constrained_mlp.1} parent=0 // pred_check
    _
  $region43: #{business_constrained_mlp.1} parent=0 // pred_check_branch
    %362 = sbr.rel (0) target = $region45
  $region44: #{business_constrained_mlp.1} parent=0 // pred_region
    _
  $region45: #{business_constrained_mlp.1} parent=0 // pred_fallthru
    _

</llo_original>
